<compile_context>
chip_gen: v7x
topology: tpu7x:2x2x1
jax: 0.10.0
libtpu: 0.0.40
codegen_flags: <defaults>
</compile_context>

<pallas_src>
import functools

import jax
import jax.numpy as jnp
from jax.experimental import pallas as pl
from jax.experimental.pallas import tpu as pltpu


# ----------------------------- Pallas kernel -------------------------------

def _fused_gnn_kernel(x_ref, w_in_ref, b_in_ref, w_conv_ref, b_conv_ref,
                      w0m_ref, w0x_ref, b0_ref, w_rest_ref, b_rest_ref,
                      w_out_ref, b_out_ref, out_ref, *, n_conv, n_rest):
    """Fused forward for a block of graphs.

    x_ref:      [bb, N, Fp]   (bb graphs per grid step, N nodes, Fp lane-padded feats)
    w_in_ref:   [Fp, Ep], b_in_ref: [1, Ep]
    w_conv_ref: [Cn, Ep, Ep], b_conv_ref: [Cn, 1, Ep]
    w0m_ref:    [Ep, Ep]  (mean half of first readout layer)
    w0x_ref:    [Ep, Ep]  (max  half of first readout layer)
    b0_ref:     [1, Ep]
    w_rest_ref: [max(R-1,1), Ep, Ep], b_rest_ref: [max(R-1,1), 1, Ep]
    w_out_ref:  [Ep, Cp], b_out_ref: [1, Cp]
    out_ref:    [bb, Cp]
    """
    bb, n_nodes, f_pad = x_ref.shape
    e_pad = w_in_ref.shape[1]

    # ---- per-node embedding: input projection + n_conv Linear+ReLU updates ----
    x = x_ref[...].reshape(bb * n_nodes, f_pad)          # lane-dense, free merge
    h = jnp.dot(x, w_in_ref[...], preferred_element_type=jnp.float32)
    h = jnp.maximum(h + b_in_ref[...], 0.0)

    w_conv = w_conv_ref[...]                              # hoisted: loaded once
    b_conv = b_conv_ref[...]
    for c in range(n_conv):                               # static unroll
        h = jnp.dot(h, w_conv[c], preferred_element_type=jnp.float32)
        h = jnp.maximum(h + b_conv[c], 0.0)

    # ---- 'mean/max' graph pooling (h never leaves the chip) ----
    h3 = h.reshape(bb, n_nodes, e_pad)
    inv_n = jnp.float32(1.0 / n_nodes)                    # constant-folded scale
    g_mean = jnp.sum(h3, axis=1) * inv_n                  # [bb, Ep]
    g_max = jnp.max(h3, axis=1)                           # [bb, Ep]

    # split-weight form of concat([g_mean, g_max], -1) @ w0  (no lane concat)
    z = (jnp.dot(g_mean, w0m_ref[...], preferred_element_type=jnp.float32)
         + jnp.dot(g_max, w0x_ref[...], preferred_element_type=jnp.float32)
         + b0_ref[...])
    z = jnp.maximum(z, 0.0)

    if n_rest > 0:
        w_rest = w_rest_ref[...]                          # hoisted: loaded once
        b_rest = b_rest_ref[...]
        for r in range(n_rest):                           # static unroll
            z = jnp.dot(z, w_rest[r], preferred_element_type=jnp.float32) + b_rest[r]
            z = jnp.maximum(z, 0.0)

    out_ref[...] = (jnp.dot(z, w_out_ref[...], preferred_element_type=jnp.float32)
                    + b_out_ref[...])


# ------------------------------- Wrapper -----------------------------------

def _round_up(x, m):
    return ((x + m - 1) // m) * m


def _pad_last(a, target):
    pad = target - a.shape[-1]
    if pad == 0:
        return a
    widths = [(0, 0)] * (a.ndim - 1) + [(0, pad)]
    return jnp.pad(a, widths)


def _pad2(a, rows, cols):
    return jnp.pad(a, ((0, rows - a.shape[0]), (0, cols - a.shape[1])))


def _pad_last2(a, rows, cols):
    return jnp.pad(a, ((0, 0), (0, rows - a.shape[1]), (0, cols - a.shape[2])))


def base_network_forward(x, params, *, n_convolutions, readout_layers):
    """x: [B, N, F] float32 node features -> logits [B, n_classes]."""
    B, N, F = x.shape
    E = params["w_in"].shape[1]
    C = params["w_out"].shape[1]

    # lane-dense padding (zero-padded rows/cols keep the math exact)
    Fp = _round_up(F, 128)
    Ep = _round_up(E, 128)
    Cp = _round_up(C, 128)

    xp = _pad_last(x, Fp)
    w_in = _pad2(params["w_in"], Fp, Ep)
    b_in = _pad_last(params["b_in"], Ep)
    w_conv = _pad_last2(params["w_conv"], Ep, Ep)
    b_conv = _pad_last(params["b_conv"], Ep)

    w0 = params["w_ro0"]                                  # [2E, E]
    w0m = _pad2(w0[:E], Ep, Ep)                           # mean half
    w0x = _pad2(w0[E:], Ep, Ep)                           # max half
    b0 = _pad_last(params["b_ro0"], Ep)

    n_rest = readout_layers - 1
    if n_rest > 0:
        w_rest = _pad_last2(params["w_ro_rest"], Ep, Ep)
        b_rest = _pad_last(params["b_ro_rest"], Ep)
    else:
        w_rest = jnp.zeros((1, Ep, Ep), jnp.float32)      # dummy, never read
        b_rest = jnp.zeros((1, 1, Ep), jnp.float32)

    w_out = _pad2(params["w_out"], Ep, Cp)
    b_out = _pad_last(params["b_out"], Cp)

    # grid over graph blocks; nodes (reduction axis) and features stay in-block
    bb = B if B <= 8 else 8
    Bp = _round_up(B, bb)
    if Bp != B:
        xp = jnp.pad(xp, ((0, Bp - B), (0, 0), (0, 0)))
    grid = (Bp // bb,)

    def _full(a):  # full-array block, constant index -> stays VMEM-resident
        return pl.BlockSpec(a.shape, lambda i, _nd=a.ndim: (0,) * _nd)

    kernel = functools.partial(_fused_gnn_kernel,
                               n_conv=n_convolutions, n_rest=n_rest)

    logits_p = pl.pallas_call(
        kernel,
        out_shape=jax.ShapeDtypeStruct((Bp, Cp), jnp.float32),
        grid=grid,
        in_specs=[
            pl.BlockSpec((bb, N, Fp), lambda i: (i, 0, 0)),
            _full(w_in), _full(b_in), _full(w_conv), _full(b_conv),
            _full(w0m), _full(w0x), _full(b0), _full(w_rest), _full(b_rest),
            _full(w_out), _full(b_out),
        ],
        out_specs=pl.BlockSpec((bb, Cp), lambda i: (i, 0)),
        compiler_params=pltpu.CompilerParams(
            dimension_semantics=("parallel",),
            vmem_limit_bytes=32 * 1024 * 1024,
        ),
    )(xp, w_in, b_in, w_conv, b_conv, w0m, w0x, b0, w_rest, b_rest, w_out, b_out)

    return logits_p[:B, :C]


# --------------------------- Parameter init --------------------------------

def init_params(key, *, n_node_features, embedding_dim, n_classes,
                n_convolutions, readout_layers, pooling):
    """Deterministic synthetic weights (PyTorch-style uniform +-1/sqrt(fan_in))."""
    assert pooling == "mean/max"
    graph_embedding = 2 * embedding_dim
    E = embedding_dim

    def linear(k, fan_in, fan_out):
        kw, kb = jax.random.split(k)
        bound = 1.0 / jnp.sqrt(fan_in)
        w = jax.random.uniform(kw, (fan_in, fan_out), jnp.float32, -bound, bound)
        b = jax.random.uniform(kb, (1, fan_out), jnp.float32, -bound, bound)
        return w, b

    keys = jax.random.split(key, 4 + n_convolutions + readout_layers)
    it = iter(keys)

    w_in, b_in = linear(next(it), n_node_features, E)

    w_conv, b_conv = [], []
    for _ in range(n_convolutions):
        w, b = linear(next(it), E, E)
        w_conv.append(w)
        b_conv.append(b)
    w_conv = jnp.stack(w_conv)                      # [Cn, E, E]
    b_conv = jnp.stack(b_conv)                      # [Cn, 1, E]

    w_ro0, b_ro0 = linear(next(it), graph_embedding, E)
    w_ro_rest, b_ro_rest = [], []
    for _ in range(readout_layers - 1):
        w, b = linear(next(it), E, E)
        w_ro_rest.append(w)
        b_ro_rest.append(b)
    if w_ro_rest:
        w_ro_rest = jnp.stack(w_ro_rest)            # [R-1, E, E]
        b_ro_rest = jnp.stack(b_ro_rest)            # [R-1, 1, E]
    else:
        w_ro_rest = jnp.zeros((0, E, E), jnp.float32)
        b_ro_rest = jnp.zeros((0, 1, E), jnp.float32)

    w_out, b_out = linear(next(it), E, n_classes)

    return dict(w_in=w_in, b_in=b_in, w_conv=w_conv, b_conv=b_conv,
                w_ro0=w_ro0, b_ro0=b_ro0, w_ro_rest=w_ro_rest,
                b_ro_rest=b_ro_rest, w_out=w_out, b_out=b_out)


# ------------------------------- Main ---------------------------------------

if __name__ == "__main__":
    # opt-equivalent configuration (small shapes)
    n_node_features = 32
    embedding_dim = 32
    n_classes = 4
    n_convolutions = 2
    readout_layers = 2
    pooling = "mean/max"
    B, N = 2, 8   # 2 graphs, 8 nodes per graph

    key = jax.random.PRNGKey(0)
    kx, kp = jax.random.split(key)

    x = jax.random.normal(kx, (B, N, n_node_features), dtype=jnp.float32)
    params = init_params(
        kp,
        n_node_features=n_node_features,
        embedding_dim=embedding_dim,
        n_classes=n_classes,
        n_convolutions=n_convolutions,
        readout_layers=readout_layers,
        pooling=pooling,
    )

    logits = base_network_forward(
        x, params,
        n_convolutions=n_convolutions,
        readout_layers=readout_layers,
    )
    jax.block_until_ready(logits)
    assert logits.shape == (B, n_classes) and logits.dtype == jnp.float32
    assert bool(jnp.all(jnp.isfinite(logits)))
    print("KERNEL_OK")
</pallas_src>

<mosaic_0001>
module attributes {stable_mosaic.version = 11 : i64} {
  func.func @_fused_gnn_kernel(%arg0: i32, %arg1: memref<2x8x128xf32, #tpu.memory_space<vmem>>, %arg2: memref<128x128xf32, #tpu.memory_space<vmem>>, %arg3: memref<1x128xf32, #tpu.memory_space<vmem>>, %arg4: memref<2x128x128xf32, #tpu.memory_space<vmem>>, %arg5: memref<2x1x128xf32, #tpu.memory_space<vmem>>, %arg6: memref<128x128xf32, #tpu.memory_space<vmem>>, %arg7: memref<128x128xf32, #tpu.memory_space<vmem>>, %arg8: memref<1x128xf32, #tpu.memory_space<vmem>>, %arg9: memref<1x128x128xf32, #tpu.memory_space<vmem>>, %arg10: memref<1x1x128xf32, #tpu.memory_space<vmem>>, %arg11: memref<128x128xf32, #tpu.memory_space<vmem>>, %arg12: memref<1x128xf32, #tpu.memory_space<vmem>>, %arg13: memref<2x128xf32, #tpu.memory_space<vmem>>) attributes {dimension_semantics = [#tpu.dimension_semantics<parallel>], iteration_bounds = array<i64: 1>, scalar_prefetch = 0 : i64, scratch_operands = 0 : i64, tpu.core_type = #tpu.core_type<tc>, window_params = [{transform_indices = @transform_0, window_bounds = array<i64: 2, 8, 128>}, {pipeline_mode = #tpu.pipeline_mode<synchronous>, transform_indices = @transform_1, window_bounds = array<i64: 128, 128>}, {pipeline_mode = #tpu.pipeline_mode<synchronous>, transform_indices = @transform_2, window_bounds = array<i64: 1, 128>}, {pipeline_mode = #tpu.pipeline_mode<synchronous>, transform_indices = @transform_3, window_bounds = array<i64: 2, 128, 128>}, {pipeline_mode = #tpu.pipeline_mode<synchronous>, transform_indices = @transform_4, window_bounds = array<i64: 2, 1, 128>}, {pipeline_mode = #tpu.pipeline_mode<synchronous>, transform_indices = @transform_5, window_bounds = array<i64: 128, 128>}, {pipeline_mode = #tpu.pipeline_mode<synchronous>, transform_indices = @transform_6, window_bounds = array<i64: 128, 128>}, {pipeline_mode = #tpu.pipeline_mode<synchronous>, transform_indices = @transform_7, window_bounds = array<i64: 1, 128>}, {pipeline_mode = #tpu.pipeline_mode<synchronous>, transform_indices = @transform_8, window_bounds = array<i64: 1, 128, 128>}, {pipeline_mode = #tpu.pipeline_mode<synchronous>, transform_indices = @transform_9, window_bounds = array<i64: 1, 1, 128>}, {pipeline_mode = #tpu.pipeline_mode<synchronous>, transform_indices = @transform_10, window_bounds = array<i64: 128, 128>}, {pipeline_mode = #tpu.pipeline_mode<synchronous>, transform_indices = @transform_11, window_bounds = array<i64: 1, 128>}, {transform_indices = @transform_12, window_bounds = array<i64: 2, 128>}]} {
    %c0 = arith.constant 0 : index
    %c0_0 = arith.constant 0 : index
    %c0_1 = arith.constant 0 : index
    %0 = vector.load %arg1[%c0, %c0_0, %c0_1] : memref<2x8x128xf32, #tpu.memory_space<vmem>>, vector<2x8x128xf32>
    %1 = vector.shape_cast %0 : vector<2x8x128xf32> to vector<16x128xf32>
    %c0_2 = arith.constant 0 : index
    %c0_3 = arith.constant 0 : index
    %2 = vector.load %arg2[%c0_2, %c0_3] : memref<128x128xf32, #tpu.memory_space<vmem>>, vector<128x128xf32>
    %cst = arith.constant dense<0.000000e+00> : vector<16x128xf32>
    %3 = tpu.matmul %1, %2, %cst {dimension_numbers = #tpu.dot_dimension_numbers<[1], [0], [0], [1], [0, 0, 1, 1], [], []>} : vector<16x128xf32>, vector<128x128xf32>, vector<16x128xf32> -> vector<16x128xf32>
    %c0_4 = arith.constant 0 : index
    %c0_5 = arith.constant 0 : index
    %4 = vector.load %arg3[%c0_4, %c0_5] : memref<1x128xf32, #tpu.memory_space<vmem>>, vector<1x128xf32>
    %5 = vector.broadcast %4 : vector<1x128xf32> to vector<16x128xf32>
    %6 = arith.addf %3, %5 : vector<16x128xf32>
    %cst_6 = arith.constant 0.000000e+00 : f32
    %7 = vector.broadcast %cst_6 : f32 to vector<16x128xf32>
    %8 = arith.maximumf %6, %7 : vector<16x128xf32>
    %c0_7 = arith.constant 0 : index
    %c0_8 = arith.constant 0 : index
    %c0_9 = arith.constant 0 : index
    %9 = vector.load %arg4[%c0_7, %c0_8, %c0_9] : memref<2x128x128xf32, #tpu.memory_space<vmem>>, vector<2x128x128xf32>
    %c0_10 = arith.constant 0 : index
    %c0_11 = arith.constant 0 : index
    %c0_12 = arith.constant 0 : index
    %10 = vector.load %arg5[%c0_10, %c0_11, %c0_12] : memref<2x1x128xf32, #tpu.memory_space<vmem>>, vector<2x1x128xf32>
    %11 = vector.extract_strided_slice %9 {offsets = [0, 0, 0], sizes = [1, 128, 128], strides = [1, 1, 1]} : vector<2x128x128xf32> to vector<1x128x128xf32>
    %12 = vector.shape_cast %11 : vector<1x128x128xf32> to vector<128x128xf32>
    %cst_13 = arith.constant dense<0.000000e+00> : vector<16x128xf32>
    %13 = tpu.matmul %8, %12, %cst_13 {dimension_numbers = #tpu.dot_dimension_numbers<[1], [0], [0], [1], [0, 0, 1, 1], [], []>} : vector<16x128xf32>, vector<128x128xf32>, vector<16x128xf32> -> vector<16x128xf32>
    %14 = vector.extract_strided_slice %10 {offsets = [0, 0, 0], sizes = [1, 1, 128], strides = [1, 1, 1]} : vector<2x1x128xf32> to vector<1x1x128xf32>
    %15 = vector.shape_cast %14 : vector<1x1x128xf32> to vector<1x128xf32>
    %16 = vector.broadcast %15 : vector<1x128xf32> to vector<16x128xf32>
    %17 = arith.addf %13, %16 : vector<16x128xf32>
    %cst_14 = arith.constant 0.000000e+00 : f32
    %18 = vector.broadcast %cst_14 : f32 to vector<16x128xf32>
    %19 = arith.maximumf %17, %18 : vector<16x128xf32>
    %20 = vector.extract_strided_slice %9 {offsets = [1, 0, 0], sizes = [1, 128, 128], strides = [1, 1, 1]} : vector<2x128x128xf32> to vector<1x128x128xf32>
    %21 = vector.shape_cast %20 : vector<1x128x128xf32> to vector<128x128xf32>
    %cst_15 = arith.constant dense<0.000000e+00> : vector<16x128xf32>
    %22 = tpu.matmul %19, %21, %cst_15 {dimension_numbers = #tpu.dot_dimension_numbers<[1], [0], [0], [1], [0, 0, 1, 1], [], []>} : vector<16x128xf32>, vector<128x128xf32>, vector<16x128xf32> -> vector<16x128xf32>
    %23 = vector.extract_strided_slice %10 {offsets = [1, 0, 0], sizes = [1, 1, 128], strides = [1, 1, 1]} : vector<2x1x128xf32> to vector<1x1x128xf32>
    %24 = vector.shape_cast %23 : vector<1x1x128xf32> to vector<1x128xf32>
    %25 = vector.broadcast %24 : vector<1x128xf32> to vector<16x128xf32>
    %26 = arith.addf %22, %25 : vector<16x128xf32>
    %cst_16 = arith.constant 0.000000e+00 : f32
    %27 = vector.broadcast %cst_16 : f32 to vector<16x128xf32>
    %28 = arith.maximumf %26, %27 : vector<16x128xf32>
    %29 = vector.shape_cast %28 : vector<16x128xf32> to vector<2x8x128xf32>
    %cst_17 = arith.constant dense<0.000000e+00> : vector<2x128xf32>
    %30 = vector.multi_reduction <add>, %29, %cst_17 [1] : vector<2x8x128xf32> to vector<2x128xf32>
    %cst_18 = arith.constant 1.250000e-01 : f32
    %31 = vector.broadcast %cst_18 : f32 to vector<2x128xf32>
    %32 = arith.mulf %30, %31 : vector<2x128xf32>
    %cst_19 = arith.constant dense<0xFF800000> : vector<2x128xf32>
    %33 = vector.multi_reduction <maximumf>, %29, %cst_19 [1] : vector<2x8x128xf32> to vector<2x128xf32>
    %c0_20 = arith.constant 0 : index
    %c0_21 = arith.constant 0 : index
    %34 = vector.load %arg6[%c0_20, %c0_21] : memref<128x128xf32, #tpu.memory_space<vmem>>, vector<128x128xf32>
    %cst_22 = arith.constant dense<0.000000e+00> : vector<2x128xf32>
    %35 = tpu.matmul %32, %34, %cst_22 {dimension_numbers = #tpu.dot_dimension_numbers<[1], [0], [0], [1], [0, 0, 1, 1], [], []>} : vector<2x128xf32>, vector<128x128xf32>, vector<2x128xf32> -> vector<2x128xf32>
    %c0_23 = arith.constant 0 : index
    %c0_24 = arith.constant 0 : index
    %36 = vector.load %arg7[%c0_23, %c0_24] : memref<128x128xf32, #tpu.memory_space<vmem>>, vector<128x128xf32>
    %cst_25 = arith.constant dense<0.000000e+00> : vector<2x128xf32>
    %37 = tpu.matmul %33, %36, %cst_25 {dimension_numbers = #tpu.dot_dimension_numbers<[1], [0], [0], [1], [0, 0, 1, 1], [], []>} : vector<2x128xf32>, vector<128x128xf32>, vector<2x128xf32> -> vector<2x128xf32>
    %38 = arith.addf %35, %37 : vector<2x128xf32>
    %c0_26 = arith.constant 0 : index
    %c0_27 = arith.constant 0 : index
    %39 = vector.load %arg8[%c0_26, %c0_27] : memref<1x128xf32, #tpu.memory_space<vmem>>, vector<1x128xf32>
    %40 = vector.broadcast %39 : vector<1x128xf32> to vector<2x128xf32>
    %41 = arith.addf %38, %40 : vector<2x128xf32>
    %cst_28 = arith.constant 0.000000e+00 : f32
    %42 = vector.broadcast %cst_28 : f32 to vector<2x128xf32>
    %43 = arith.maximumf %41, %42 : vector<2x128xf32>
    %c0_29 = arith.constant 0 : index
    %c0_30 = arith.constant 0 : index
    %c0_31 = arith.constant 0 : index
    %44 = vector.load %arg9[%c0_29, %c0_30, %c0_31] : memref<1x128x128xf32, #tpu.memory_space<vmem>>, vector<1x128x128xf32>
    %c0_32 = arith.constant 0 : index
    %c0_33 = arith.constant 0 : index
    %c0_34 = arith.constant 0 : index
    %45 = vector.load %arg10[%c0_32, %c0_33, %c0_34] : memref<1x1x128xf32, #tpu.memory_space<vmem>>, vector<1x1x128xf32>
    %46 = vector.shape_cast %44 : vector<1x128x128xf32> to vector<128x128xf32>
    %cst_35 = arith.constant dense<0.000000e+00> : vector<2x128xf32>
    %47 = tpu.matmul %43, %46, %cst_35 {dimension_numbers = #tpu.dot_dimension_numbers<[1], [0], [0], [1], [0, 0, 1, 1], [], []>} : vector<2x128xf32>, vector<128x128xf32>, vector<2x128xf32> -> vector<2x128xf32>
    %48 = vector.shape_cast %45 : vector<1x1x128xf32> to vector<1x128xf32>
    %49 = vector.broadcast %48 : vector<1x128xf32> to vector<2x128xf32>
    %50 = arith.addf %47, %49 : vector<2x128xf32>
    %cst_36 = arith.constant 0.000000e+00 : f32
    %51 = vector.broadcast %cst_36 : f32 to vector<2x128xf32>
    %52 = arith.maximumf %50, %51 : vector<2x128xf32>
    %c0_37 = arith.constant 0 : index
    %c0_38 = arith.constant 0 : index
    %53 = vector.load %arg11[%c0_37, %c0_38] : memref<128x128xf32, #tpu.memory_space<vmem>>, vector<128x128xf32>
    %cst_39 = arith.constant dense<0.000000e+00> : vector<2x128xf32>
    %54 = tpu.matmul %52, %53, %cst_39 {dimension_numbers = #tpu.dot_dimension_numbers<[1], [0], [0], [1], [0, 0, 1, 1], [], []>} : vector<2x128xf32>, vector<128x128xf32>, vector<2x128xf32> -> vector<2x128xf32>
    %c0_40 = arith.constant 0 : index
    %c0_41 = arith.constant 0 : index
    %55 = vector.load %arg12[%c0_40, %c0_41] : memref<1x128xf32, #tpu.memory_space<vmem>>, vector<1x128xf32>
    %56 = vector.broadcast %55 : vector<1x128xf32> to vector<2x128xf32>
    %57 = arith.addf %54, %56 : vector<2x128xf32>
    %c0_42 = arith.constant 0 : index
    %c0_43 = arith.constant 0 : index
    %58 = vector.load %arg13[%c0_42, %c0_43] : memref<2x128xf32, #tpu.memory_space<vmem>>, vector<2x128xf32>
    tpu.vector_store %arg13[%c0_42, %c0_43], %57 {strides = array<i32>} : memref<2x128xf32, #tpu.memory_space<vmem>>, vector<2x128xf32>,
    return
  }
  func.func @transform_0(%arg0: i32) -> (i32, i32, i32) {
    %c0_i32 = arith.constant 0 : i32
    %c0_i32_0 = arith.constant 0 : i32
    %c0_i32_1 = arith.constant 0 : i32
    return %arg0, %c0_i32, %c0_i32_0 : i32, i32, i32
  }
  func.func @transform_1(%arg0: i32) -> (i32, i32) {
    %c0_i32 = arith.constant 0 : i32
    %c0_i32_0 = arith.constant 0 : i32
    %c0_i32_1 = arith.constant 0 : i32
    return %c0_i32, %c0_i32_0 : i32, i32
  }
  func.func @transform_2(%arg0: i32) -> (i32, i32) {
    %c0_i32 = arith.constant 0 : i32
    %c0_i32_0 = arith.constant 0 : i32
    %c0_i32_1 = arith.constant 0 : i32
    return %c0_i32, %c0_i32_0 : i32, i32
  }
  func.func @transform_3(%arg0: i32) -> (i32, i32, i32) {
    %c0_i32 = arith.constant 0 : i32
    %c0_i32_0 = arith.constant 0 : i32
    %c0_i32_1 = arith.constant 0 : i32
    %c0_i32_2 = arith.constant 0 : i32
    return %c0_i32, %c0_i32_0, %c0_i32_1 : i32, i32, i32
  }
  func.func @transform_4(%arg0: i32) -> (i32, i32, i32) {
    %c0_i32 = arith.constant 0 : i32
    %c0_i32_0 = arith.constant 0 : i32
    %c0_i32_1 = arith.constant 0 : i32
    %c0_i32_2 = arith.constant 0 : i32
    return %c0_i32, %c0_i32_0, %c0_i32_1 : i32, i32, i32
  }
  func.func @transform_5(%arg0: i32) -> (i32, i32) {
    %c0_i32 = arith.constant 0 : i32
    %c0_i32_0 = arith.constant 0 : i32
    %c0_i32_1 = arith.constant 0 : i32
    return %c0_i32, %c0_i32_0 : i32, i32
  }
  func.func @transform_6(%arg0: i32) -> (i32, i32) {
    %c0_i32 = arith.constant 0 : i32
    %c0_i32_0 = arith.constant 0 : i32
    %c0_i32_1 = arith.constant 0 : i32
    return %c0_i32, %c0_i32_0 : i32, i32
  }
  func.func @transform_7(%arg0: i32) -> (i32, i32) {
    %c0_i32 = arith.constant 0 : i32
    %c0_i32_0 = arith.constant 0 : i32
    %c0_i32_1 = arith.constant 0 : i32
    return %c0_i32, %c0_i32_0 : i32, i32
  }
  func.func @transform_8(%arg0: i32) -> (i32, i32, i32) {
    %c0_i32 = arith.constant 0 : i32
    %c0_i32_0 = arith.constant 0 : i32
    %c0_i32_1 = arith.constant 0 : i32
    %c0_i32_2 = arith.constant 0 : i32
    return %c0_i32, %c0_i32_0, %c0_i32_1 : i32, i32, i32
  }
  func.func @transform_9(%arg0: i32) -> (i32, i32, i32) {
    %c0_i32 = arith.constant 0 : i32
    %c0_i32_0 = arith.constant 0 : i32
    %c0_i32_1 = arith.constant 0 : i32
    %c0_i32_2 = arith.constant 0 : i32
    return %c0_i32, %c0_i32_0, %c0_i32_1 : i32, i32, i32
  }
  func.func @transform_10(%arg0: i32) -> (i32, i32) {
    %c0_i32 = arith.constant 0 : i32
    %c0_i32_0 = arith.constant 0 : i32
    %c0_i32_1 = arith.constant 0 : i32
    return %c0_i32, %c0_i32_0 : i32, i32
  }
  func.func @transform_11(%arg0: i32) -> (i32, i32) {
    %c0_i32 = arith.constant 0 : i32
    %c0_i32_0 = arith.constant 0 : i32
    %c0_i32_1 = arith.constant 0 : i32
    return %c0_i32, %c0_i32_0 : i32, i32
  }
  func.func @transform_12(%arg0: i32) -> (i32, i32) {
    %c0_i32 = arith.constant 0 : i32
    %c0_i32_0 = arith.constant 0 : i32
    return %arg0, %c0_i32 : i32, i32
  }
}

</mosaic_0001>

<llo_original>
// kernel: tpu_custom_call.1
$region0: #{tpu_custom_call.1}
  #allocation0 [shape = 'u32[]', space=smem, size = 0x4, offset = 0x4, fixed_abs, tag = 'smem constant byte address 0x4 - core index']
  #allocation1 [shape = 'u32[144,128]{1,0:T(1,128)}', space=vmem, size = 0x12000, scoped, tag = 'internal scratch']
  %s0 = inlined_call_operand.hbm [shape: f32[2,8,128], index: 0, kind: input, shape index: {}]
  %s1 = inlined_call_operand.hbm [shape: f32[128,128], index: 1, kind: input, shape index: {}]
  %s2 = inlined_call_operand.vmem [shape: f32[1,128], index: 2, kind: input, shape index: {}]
  %s3 = inlined_call_operand.hbm [shape: f32[2,128,128], index: 3, kind: input, shape index: {}]
  %s4 = inlined_call_operand.vmem [shape: f32[2,1,128], index: 4, kind: input, shape index: {}]
  %s5 = inlined_call_operand.hbm [shape: f32[128,128], index: 5, kind: input, shape index: {}]
  %s6 = inlined_call_operand.hbm [shape: f32[128,128], index: 6, kind: input, shape index: {}]
  %s7 = inlined_call_operand.vmem [shape: f32[1,128], index: 7, kind: input, shape index: {}]
  %s8 = inlined_call_operand.hbm [shape: f32[1,128,128], index: 8, kind: input, shape index: {}]
  %s9 = inlined_call_operand.vmem [shape: f32[1,1,128], index: 9, kind: input, shape index: {}]
  %s10 = inlined_call_operand.hbm [shape: f32[128,128], index: 10, kind: input, shape index: {}]
  %s11 = inlined_call_operand.vmem [shape: f32[1,128], index: 11, kind: input, shape index: {}]
  %s12 = inlined_call_operand.hbm [shape: f32[2,128], index: 12, kind: output, shape index: {}]
  %s13 = sld [smem:[#allocation0]]
  $region86: #{tpu_custom_call.1} parent=0
    _
  %s15 = ssub.s32 1, %s13
  %s16 = scalar_select 0, %s15, %s13
  $region1: #{tpu_custom_call.1} parent=0
    #allocation2 [shape = 'u8[8192]{0}', space=vmem, size = 0x2000, scoped, tag = 'input window, operand 0, single buffered']
    #allocation3 [shape = 's32[1]{0}', space=sflag, size = 0x4, scoped, tag = 'scoped memory for tpu_custom_call.1']
    #allocation4 [shape = 's32[1]{0}', space=sflag, size = 0x4, scoped, tag = 'scoped memory for tpu_custom_call.1']
    #allocation5 [shape = 'u8[65536]{0}', space=vmem, size = 0x10000, scoped, tag = 'input window, operand 1, single buffered']
    #allocation6 [shape = 's32[1]{0}', space=sflag, size = 0x4, scoped, tag = 'scoped memory for tpu_custom_call.1']
    #allocation7 [shape = 'u8[131072]{0}', space=vmem, size = 0x20000, scoped, tag = 'input window, operand 3, single buffered']
    #allocation8 [shape = 'u8[65536]{0}', space=vmem, size = 0x10000, scoped, tag = 'input window, operand 5, single buffered']
    #allocation9 [shape = 's32[1]{0}', space=sflag, size = 0x4, scoped, tag = 'scoped memory for tpu_custom_call.1']
    #allocation10 [shape = 'u8[65536]{0}', space=vmem, size = 0x10000, scoped, tag = 'input window, operand 6, single buffered']
    #allocation11 [shape = 'u8[65536]{0}', space=vmem, size = 0x10000, scoped, tag = 'input window, operand 8, single buffered']
    #allocation12 [shape = 's32[1]{0}', space=sflag, size = 0x4, scoped, tag = 'scoped memory for tpu_custom_call.1']
    #allocation13 [shape = 'u8[65536]{0}', space=vmem, size = 0x10000, scoped, tag = 'input window, operand 10, single buffered']
    #allocation14 [shape = 'u8[1024]{0}', space=vmem, size = 0x400, scoped, tag = 'output window, operand 0, single buffered']
    %17 = vsyncpa [#allocation3], 0
    %18 = vsyncpa [#allocation6], 0
    %19 = vsyncpa [#allocation9], 0
    %20 = vsyncpa [#allocation12], 0
    %21 = vsyncpa [#allocation4], 0
    // Predicated region
    $region2: #{tpu_custom_call.1} parent=1 // pred_check
      _
    $region3: #{tpu_custom_call.1} parent=1 // pred_check_branch
      %23 = sbr.rel (0) target = $region5
    $region4: #{tpu_custom_call.1} parent=1 // pred_region
      %s25 = ssub.s32 256, 256
      %26 = vsyncadd [#allocation3], %s25
      %s27 = sshll.u32 [#allocation2], 4
      %s28 = int_to_ptr.vmem [resolvable:$true] %s27
      %33 = dma.hbm_to_vmem [thread:$0]  %s0, 256, %s28, [#allocation3], 128, 128, 8
    $region5: #{tpu_custom_call.1} parent=1 // pred_fallthru
      _
    // Predicated region
    $region6: #{tpu_custom_call.1} parent=1 // pred_check
      _
    $region7: #{tpu_custom_call.1} parent=1 // pred_check_branch
      %35 = sbr.rel (0) target = $region9
    $region8: #{tpu_custom_call.1} parent=1 // pred_region
      %s37 = ssub.s32 2048, 2048
      %38 = vsyncadd [#allocation6], %s37
      %s39 = sshll.u32 [#allocation5], 4
      %s40 = int_to_ptr.vmem [resolvable:$true] %s39
      %45 = dma.hbm_to_vmem [thread:$0]  %s1, 2048, %s40, [#allocation6], 128, 128, 8
    $region9: #{tpu_custom_call.1} parent=1 // pred_fallthru
      _
    // Predicated region
    $region10: #{tpu_custom_call.1} parent=1 // pred_check
      _
    $region11: #{tpu_custom_call.1} parent=1 // pred_check_branch
      %47 = sbr.rel (0) target = $region13
    $region12: #{tpu_custom_call.1} parent=1 // pred_region
      _
    $region13: #{tpu_custom_call.1} parent=1 // pred_fallthru
      _
    // Predicated region
    $region14: #{tpu_custom_call.1} parent=1 // pred_check
      _
    $region15: #{tpu_custom_call.1} parent=1 // pred_check_branch
      %49 = sbr.rel (0) target = $region17
    $region16: #{tpu_custom_call.1} parent=1 // pred_region
      %s51 = ssub.s32 4096, 4096
      %52 = vsyncadd [#allocation6], %s51
      %s53 = sshll.u32 [#allocation7], 4
      %s54 = int_to_ptr.vmem [resolvable:$true] %s53
      %59 = dma.hbm_to_vmem [thread:$0]  %s3, 4096, %s54, [#allocation6], 128, 128, 8
    $region17: #{tpu_custom_call.1} parent=1 // pred_fallthru
      _
    // Predicated region
    $region18: #{tpu_custom_call.1} parent=1 // pred_check
      _
    $region19: #{tpu_custom_call.1} parent=1 // pred_check_branch
      %61 = sbr.rel (0) target = $region21
    $region20: #{tpu_custom_call.1} parent=1 // pred_region
      _
    $region21: #{tpu_custom_call.1} parent=1 // pred_fallthru
      _
    // Predicated region
    $region22: #{tpu_custom_call.1} parent=1 // pred_check
      _
    $region23: #{tpu_custom_call.1} parent=1 // pred_check_branch
      %63 = sbr.rel (0) target = $region25
    $region24: #{tpu_custom_call.1} parent=1 // pred_region
      %s65 = ssub.s32 2048, 2048
      %66 = vsyncadd [#allocation9], %s65
      %s67 = sshll.u32 [#allocation8], 4
      %s68 = int_to_ptr.vmem [resolvable:$true] %s67
      %73 = dma.hbm_to_vmem [thread:$0]  %s5, 2048, %s68, [#allocation9], 128, 128, 8
    $region25: #{tpu_custom_call.1} parent=1 // pred_fallthru
      _
    // Predicated region
    $region26: #{tpu_custom_call.1} parent=1 // pred_check
      _
    $region27: #{tpu_custom_call.1} parent=1 // pred_check_branch
      %75 = sbr.rel (0) target = $region29
    $region28: #{tpu_custom_call.1} parent=1 // pred_region
      %s77 = ssub.s32 2048, 2048
      %78 = vsyncadd [#allocation9], %s77
      %s79 = sshll.u32 [#allocation10], 4
      %s80 = int_to_ptr.vmem [resolvable:$true] %s79
      %85 = dma.hbm_to_vmem [thread:$0]  %s6, 2048, %s80, [#allocation9], 128, 128, 8
    $region29: #{tpu_custom_call.1} parent=1 // pred_fallthru
      _
    // Predicated region
    $region30: #{tpu_custom_call.1} parent=1 // pred_check
      _
    $region31: #{tpu_custom_call.1} parent=1 // pred_check_branch
      %87 = sbr.rel (0) target = $region33
    $region32: #{tpu_custom_call.1} parent=1 // pred_region
      _
    $region33: #{tpu_custom_call.1} parent=1 // pred_fallthru
      _
    // Predicated region
    $region34: #{tpu_custom_call.1} parent=1 // pred_check
      _
    $region35: #{tpu_custom_call.1} parent=1 // pred_check_branch
      %89 = sbr.rel (0) target = $region37
    $region36: #{tpu_custom_call.1} parent=1 // pred_region
      %s91 = ssub.s32 2048, 2048
      %92 = vsyncadd [#allocation12], %s91
      %s93 = sshll.u32 [#allocation11], 4
      %s94 = int_to_ptr.vmem [resolvable:$true] %s93
      %99 = dma.hbm_to_vmem [thread:$0]  %s8, 2048, %s94, [#allocation12], 128, 128, 8
    $region37: #{tpu_custom_call.1} parent=1 // pred_fallthru
      _
    // Predicated region
    $region38: #{tpu_custom_call.1} parent=1 // pred_check
      _
    $region39: #{tpu_custom_call.1} parent=1 // pred_check_branch
      %101 = sbr.rel (0) target = $region41
    $region40: #{tpu_custom_call.1} parent=1 // pred_region
      _
    $region41: #{tpu_custom_call.1} parent=1 // pred_fallthru
      _
    // Predicated region
    $region42: #{tpu_custom_call.1} parent=1 // pred_check
      _
    $region43: #{tpu_custom_call.1} parent=1 // pred_check_branch
      %103 = sbr.rel (0) target = $region45
    $region44: #{tpu_custom_call.1} parent=1 // pred_region
      %s105 = ssub.s32 2048, 2048
      %106 = vsyncadd [#allocation12], %s105
      %s107 = sshll.u32 [#allocation13], 4
      %s108 = int_to_ptr.vmem [resolvable:$true] %s107
      %113 = dma.hbm_to_vmem [thread:$0]  %s10, 2048, %s108, [#allocation12], 128, 128, 8
    $region45: #{tpu_custom_call.1} parent=1 // pred_fallthru
      _
    // Predicated region
    $region46: #{tpu_custom_call.1} parent=1 // pred_check
      _
    $region47: #{tpu_custom_call.1} parent=1 // pred_check_branch
      %115 = sbr.rel (0) target = $region49
    $region48: #{tpu_custom_call.1} parent=1 // pred_region
      _
    $region49: #{tpu_custom_call.1} parent=1 // pred_fallthru
      _
    // Predicated region
    $region50: #{tpu_custom_call.1} parent=1 // pred_check
      _
    $region51: #{tpu_custom_call.1} parent=1 // pred_check_branch
      %117 = sbr.rel (0) target = $region53
    $region52: #{tpu_custom_call.1} parent=1 // pred_region
      %118 = dma.done [#allocation3], 256
    $region53: #{tpu_custom_call.1} parent=1 // pred_fallthru
      _
    // Predicated region
    $region54: #{tpu_custom_call.1} parent=1 // pred_check
      _
    $region55: #{tpu_custom_call.1} parent=1 // pred_check_branch
      %120 = sbr.rel (0) target = $region57
    $region56: #{tpu_custom_call.1} parent=1 // pred_region
      %121 = dma.done [#allocation6], 2048
    $region57: #{tpu_custom_call.1} parent=1 // pred_fallthru
      _
    // Predicated region
    $region58: #{tpu_custom_call.1} parent=1 // pred_check
      _
    $region59: #{tpu_custom_call.1} parent=1 // pred_check_branch
      %123 = sbr.rel (0) target = $region61
    $region60: #{tpu_custom_call.1} parent=1 // pred_region
      %124 = dma.done [#allocation6], 4096
    $region61: #{tpu_custom_call.1} parent=1 // pred_fallthru
      _
    // Predicated region
    $region62: #{tpu_custom_call.1} parent=1 // pred_check
      _
    $region63: #{tpu_custom_call.1} parent=1 // pred_check_branch
      %126 = sbr.rel (0) target = $region65
    $region64: #{tpu_custom_call.1} parent=1 // pred_region
      %127 = dma.done [#allocation9], 2048
    $region65: #{tpu_custom_call.1} parent=1 // pred_fallthru
      _
    // Predicated region
    $region66: #{tpu_custom_call.1} parent=1 // pred_check
      _
    $region67: #{tpu_custom_call.1} parent=1 // pred_check_branch
      %129 = sbr.rel (0) target = $region69
    $region68: #{tpu_custom_call.1} parent=1 // pred_region
      %130 = dma.done [#allocation9], 2048
    $region69: #{tpu_custom_call.1} parent=1 // pred_fallthru
      _
    // Predicated region
    $region70: #{tpu_custom_call.1} parent=1 // pred_check
      _
    $region71: #{tpu_custom_call.1} parent=1 // pred_check_branch
      %132 = sbr.rel (0) target = $region73
    $region72: #{tpu_custom_call.1} parent=1 // pred_region
      %133 = dma.done [#allocation12], 2048
    $region73: #{tpu_custom_call.1} parent=1 // pred_fallthru
      _
    // Predicated region
    $region74: #{tpu_custom_call.1} parent=1 // pred_check
      _
    $region75: #{tpu_custom_call.1} parent=1 // pred_check_branch
      %135 = sbr.rel (0) target = $region77
    $region76: #{tpu_custom_call.1} parent=1 // pred_region
      %136 = dma.done [#allocation12], 2048
    $region77: #{tpu_custom_call.1} parent=1 // pred_fallthru
      _
    %v137 = vld [vmem:[#allocation2] sm:$0xff]
    %v138 = vld [vmem:[#allocation2 + $0x8] sm:$0xff]
    %v139 = vld [vmem:[#allocation5] sm:$0xff]
    %v140 = vld [vmem:[#allocation5 + $0x8] sm:$0xff]
    %v141 = vld [vmem:[#allocation5 + $0x10] sm:$0xff]
    %v142 = vld [vmem:[#allocation5 + $0x18] sm:$0xff]
    %v143 = vld [vmem:[#allocation5 + $0x20] sm:$0xff]
    %v144 = vld [vmem:[#allocation5 + $0x28] sm:$0xff]
    %v145 = vld [vmem:[#allocation5 + $0x30] sm:$0xff]
    %v146 = vld [vmem:[#allocation5 + $0x38] sm:$0xff]
    %v147 = vld [vmem:[#allocation5 + $0x40] sm:$0xff]
    %v148 = vld [vmem:[#allocation5 + $0x48] sm:$0xff]
    %v149 = vld [vmem:[#allocation5 + $0x50] sm:$0xff]
    %v150 = vld [vmem:[#allocation5 + $0x58] sm:$0xff]
    %v151 = vld [vmem:[#allocation5 + $0x60] sm:$0xff]
    %v152 = vld [vmem:[#allocation5 + $0x68] sm:$0xff]
    %v153 = vld [vmem:[#allocation5 + $0x70] sm:$0xff]
    %v154 = vld [vmem:[#allocation5 + $0x78] sm:$0xff]
    %v155 = vld [vmem:[%s2] sm:$0x1]
    %v157 = vlaneseq
    %v158 = vshrl.u32 %v157, 7
    %v159 = vsub.s32 0, %v158
    %v160 = vrot.slane %v155, %v159
    %162 = vmatprep.subr.mxu0 0.0
    %163 = vmatpush1.msra.mxu0 %v139
    %164 = vmatprep.subr.mxu0 0.0
    %165 = vmatpush1.msra.mxu0 %v140
    %166 = vmatprep.subr.mxu0 0.0
    %167 = vmatpush1.msra.mxu0 %v141
    %168 = vmatprep.subr.mxu0 0.0
    %169 = vmatpush1.msra.mxu0 %v142
    %170 = vmatprep.subr.mxu0 0.0
    %171 = vmatpush1.msra.mxu0 %v143
    %172 = vmatprep.subr.mxu0 0.0
    %173 = vmatpush1.msra.mxu0 %v144
    %174 = vmatprep.subr.mxu0 0.0
    %175 = vmatpush1.msra.mxu0 %v145
    %176 = vmatprep.subr.mxu0 0.0
    %177 = vmatpush1.msra.mxu0 %v146
    %178 = vmatprep.subr.mxu0 0.0
    %179 = vmatpush1.msra.mxu0 %v147
    %180 = vmatprep.subr.mxu0 0.0
    %181 = vmatpush1.msra.mxu0 %v148
    %182 = vmatprep.subr.mxu0 0.0
    %183 = vmatpush1.msra.mxu0 %v149
    %184 = vmatprep.subr.mxu0 0.0
    %185 = vmatpush1.msra.mxu0 %v150
    %186 = vmatprep.subr.mxu0 0.0
    %187 = vmatpush1.msra.mxu0 %v151
    %188 = vmatprep.subr.mxu0 0.0
    %189 = vmatpush1.msra.mxu0 %v152
    %190 = vmatprep.subr.mxu0 0.0
    %191 = vmatpush1.msra.mxu0 %v153
    %192 = vmatprep.subr.mxu0 0.0
    %193 = vmatpush1.msra.mxu0 %v154
    %194 = vmatprep.subr.mxu0 0.0
    %195 = vmatpush1.msra.mxu0 0.0
    %196 = vmatprep.subr.mxu0 0.0
    %197 = vmatpush1.msra.mxu0 0.0
    %198 = vmatprep.subr.mxu0 0.0
    %199 = vmatpush1.msra.mxu0 0.0
    %200 = vmatprep.subr.mxu0 0.0
    %201 = vmatpush1.msra.mxu0 0.0
    %202 = vmatprep.subr.mxu0 0.0
    %203 = vmatpush1.msra.mxu0 0.0
    %204 = vmatprep.subr.mxu0 0.0
    %205 = vmatpush1.msra.mxu0 0.0
    %206 = vmatprep.subr.mxu0 0.0
    %207 = vmatpush1.msra.mxu0 0.0
    %208 = vmatprep.subr.mxu0 0.0
    %209 = vmatpush1.msra.mxu0 0.0
    %210 = vmatprep.subr.mxu0 0.0
    %211 = vmatpush1.msra.mxu0 0.0
    %212 = vmatprep.subr.mxu0 0.0
    %213 = vmatpush1.msra.mxu0 0.0
    %214 = vmatprep.subr.mxu0 0.0
    %215 = vmatpush1.msra.mxu0 0.0
    %216 = vmatprep.subr.mxu0 0.0
    %217 = vmatpush1.msra.mxu0 0.0
    %218 = vmatprep.subr.mxu0 0.0
    %219 = vmatpush1.msra.mxu0 0.0
    %220 = vmatprep.subr.mxu0 0.0
    %221 = vmatpush1.msra.mxu0 0.0
    %222 = vmatprep.subr.mxu0 0.0
    %223 = vmatpush1.msra.mxu0 0.0
    %224 = vmatprep.subr.mxu0 0.0
    %225 = vmatpush1.msra.mxu0 0.0
    %226 = vmatprep.mubr.f32.mxu0 0.0
    %227 = vmatmul.mubr.f32.gmra.mrb[0].mxu0 %v137
    %v228 = vpop.f32.mrb[0].mxu0
    %v229 = vadd.f32 %v160, %v228
    %v230 = vpop.f32.mrb[0].mxu0
    %231 = vmatprep.mubr.f32.mxu0 0.0
    %232 = vmatmul.mubr.f32.gmra.mrb[0].mxu0 %v138
    %v233 = vpop.f32.mrb[0].mxu0
    %v234 = vadd.f32 %v160, %v233
    %v235 = vpop.f32.mrb[0].mxu0
    %236 = vdwg.mxu0
    %v237 = vmax.f32 %v229, 0.0
    %v238 = vmax.f32 %v234, 0.0
    %v239 = vld [vmem:[#allocation7] sm:$0xff]
    %v240 = vld [vmem:[#allocation7 + $0x8] sm:$0xff]
    %v241 = vld [vmem:[#allocation7 + $0x10] sm:$0xff]
    %v242 = vld [vmem:[#allocation7 + $0x18] sm:$0xff]
    %v243 = vld [vmem:[#allocation7 + $0x20] sm:$0xff]
    %v244 = vld [vmem:[#allocation7 + $0x28] sm:$0xff]
    %v245 = vld [vmem:[#allocation7 + $0x30] sm:$0xff]
    %v246 = vld [vmem:[#allocation7 + $0x38] sm:$0xff]
    %v247 = vld [vmem:[#allocation7 + $0x40] sm:$0xff]
    %v248 = vld [vmem:[#allocation7 + $0x48] sm:$0xff]
    %v249 = vld [vmem:[#allocation7 + $0x50] sm:$0xff]
    %v250 = vld [vmem:[#allocation7 + $0x58] sm:$0xff]
    %v251 = vld [vmem:[#allocation7 + $0x60] sm:$0xff]
    %v252 = vld [vmem:[#allocation7 + $0x68] sm:$0xff]
    %v253 = vld [vmem:[#allocation7 + $0x70] sm:$0xff]
    %v254 = vld [vmem:[#allocation7 + $0x78] sm:$0xff]
    %v255 = vld [vmem:[#allocation7 + $0x80] sm:$0xff]
    %v256 = vld [vmem:[#allocation7 + $0x88] sm:$0xff]
    %v257 = vld [vmem:[#allocation7 + $0x90] sm:$0xff]
    %v258 = vld [vmem:[#allocation7 + $0x98] sm:$0xff]
    %v259 = vld [vmem:[#allocation7 + $0xa0] sm:$0xff]
    %v260 = vld [vmem:[#allocation7 + $0xa8] sm:$0xff]
    %v261 = vld [vmem:[#allocation7 + $0xb0] sm:$0xff]
    %v262 = vld [vmem:[#allocation7 + $0xb8] sm:$0xff]
    %v263 = vld [vmem:[#allocation7 + $0xc0] sm:$0xff]
    %v264 = vld [vmem:[#allocation7 + $0xc8] sm:$0xff]
    %v265 = vld [vmem:[#allocation7 + $0xd0] sm:$0xff]
    %v266 = vld [vmem:[#allocation7 + $0xd8] sm:$0xff]
    %v267 = vld [vmem:[#allocation7 + $0xe0] sm:$0xff]
    %v268 = vld [vmem:[#allocation7 + $0xe8] sm:$0xff]
    %v269 = vld [vmem:[#allocation7 + $0xf0] sm:$0xff]
    %v270 = vld [vmem:[#allocation7 + $0xf8] sm:$0xff]
    %v271 = vld [vmem:[%s4] sm:$0x1]
    %v272 = vld [vmem:[%s4 + $0x1] sm:$0x1]
    %v274 = vlaneseq
    %v275 = vshrl.u32 %v274, 7
    %v276 = vsub.s32 0, %v275
    %v277 = vrot.slane %v271, %v276
    %279 = vmatprep.subr.mxu0 0.0
    %280 = vmatpush1.msra.mxu0 %v239
    %281 = vmatprep.subr.mxu0 0.0
    %282 = vmatpush1.msra.mxu0 %v240
    %283 = vmatprep.subr.mxu0 0.0
    %284 = vmatpush1.msra.mxu0 %v241
    %285 = vmatprep.subr.mxu0 0.0
    %286 = vmatpush1.msra.mxu0 %v242
    %287 = vmatprep.subr.mxu0 0.0
    %288 = vmatpush1.msra.mxu0 %v243
    %289 = vmatprep.subr.mxu0 0.0
    %290 = vmatpush1.msra.mxu0 %v244
    %291 = vmatprep.subr.mxu0 0.0
    %292 = vmatpush1.msra.mxu0 %v245
    %293 = vmatprep.subr.mxu0 0.0
    %294 = vmatpush1.msra.mxu0 %v246
    %295 = vmatprep.subr.mxu0 0.0
    %296 = vmatpush1.msra.mxu0 %v247
    %297 = vmatprep.subr.mxu0 0.0
    %298 = vmatpush1.msra.mxu0 %v248
    %299 = vmatprep.subr.mxu0 0.0
    %300 = vmatpush1.msra.mxu0 %v249
    %301 = vmatprep.subr.mxu0 0.0
    %302 = vmatpush1.msra.mxu0 %v250
    %303 = vmatprep.subr.mxu0 0.0
    %304 = vmatpush1.msra.mxu0 %v251
    %305 = vmatprep.subr.mxu0 0.0
    %306 = vmatpush1.msra.mxu0 %v252
    %307 = vmatprep.subr.mxu0 0.0
    %308 = vmatpush1.msra.mxu0 %v253
    %309 = vmatprep.subr.mxu0 0.0
    %310 = vmatpush1.msra.mxu0 %v254
    %311 = vmatprep.subr.mxu0 0.0
    %312 = vmatpush1.msra.mxu0 0.0
    %313 = vmatprep.subr.mxu0 0.0
    %314 = vmatpush1.msra.mxu0 0.0
    %315 = vmatprep.subr.mxu0 0.0
    %316 = vmatpush1.msra.mxu0 0.0
    %317 = vmatprep.subr.mxu0 0.0
    %318 = vmatpush1.msra.mxu0 0.0
    %319 = vmatprep.subr.mxu0 0.0
    %320 = vmatpush1.msra.mxu0 0.0
    %321 = vmatprep.subr.mxu0 0.0
    %322 = vmatpush1.msra.mxu0 0.0
    %323 = vmatprep.subr.mxu0 0.0
    %324 = vmatpush1.msra.mxu0 0.0
    %325 = vmatprep.subr.mxu0 0.0
    %326 = vmatpush1.msra.mxu0 0.0
    %327 = vmatprep.subr.mxu0 0.0
    %328 = vmatpush1.msra.mxu0 0.0
    %329 = vmatprep.subr.mxu0 0.0
    %330 = vmatpush1.msra.mxu0 0.0
    %331 = vmatprep.subr.mxu0 0.0
    %332 = vmatpush1.msra.mxu0 0.0
    %333 = vmatprep.subr.mxu0 0.0
    %334 = vmatpush1.msra.mxu0 0.0
    %335 = vmatprep.subr.mxu0 0.0
    %336 = vmatpush1.msra.mxu0 0.0
    %337 = vmatprep.subr.mxu0 0.0
    %338 = vmatpush1.msra.mxu0 0.0
    %339 = vmatprep.subr.mxu0 0.0
    %340 = vmatpush1.msra.mxu0 0.0
    %341 = vmatprep.subr.mxu0 0.0
    %342 = vmatpush1.msra.mxu0 0.0
    %343 = vmatprep.mubr.f32.mxu0 0.0
    %344 = vmatmul.mubr.f32.gmra.mrb[0].mxu0 %v237
    %v345 = vpop.f32.mrb[0].mxu0
    %v346 = vadd.f32 %v277, %v345
    %v347 = vpop.f32.mrb[0].mxu0
    %348 = vmatprep.mubr.f32.mxu0 0.0
    %349 = vmatmul.mubr.f32.gmra.mrb[0].mxu0 %v238
    %v350 = vpop.f32.mrb[0].mxu0
    %v351 = vadd.f32 %v277, %v350
    %v352 = vpop.f32.mrb[0].mxu0
    %353 = vdwg.mxu0
    %v354 = vmax.f32 %v346, 0.0
    %v355 = vmax.f32 %v351, 0.0
    %v357 = vlaneseq
    %v358 = vshrl.u32 %v357, 7
    %v359 = vsub.s32 0, %v358
    %v360 = vrot.slane %v272, %v359
    %362 = vmatprep.subr.mxu0 0.0
    %363 = vmatpush1.msra.mxu0 %v255
    %364 = vmatprep.subr.mxu0 0.0
    %365 = vmatpush1.msra.mxu0 %v256
    %366 = vmatprep.subr.mxu0 0.0
    %367 = vmatpush1.msra.mxu0 %v257
    %368 = vmatprep.subr.mxu0 0.0
    %369 = vmatpush1.msra.mxu0 %v258
    %370 = vmatprep.subr.mxu0 0.0
    %371 = vmatpush1.msra.mxu0 %v259
    %372 = vmatprep.subr.mxu0 0.0
    %373 = vmatpush1.msra.mxu0 %v260
    %374 = vmatprep.subr.mxu0 0.0
    %375 = vmatpush1.msra.mxu0 %v261
    %376 = vmatprep.subr.mxu0 0.0
    %377 = vmatpush1.msra.mxu0 %v262
    %378 = vmatprep.subr.mxu0 0.0
    %379 = vmatpush1.msra.mxu0 %v263
    %380 = vmatprep.subr.mxu0 0.0
    %381 = vmatpush1.msra.mxu0 %v264
    %382 = vmatprep.subr.mxu0 0.0
    %383 = vmatpush1.msra.mxu0 %v265
    %384 = vmatprep.subr.mxu0 0.0
    %385 = vmatpush1.msra.mxu0 %v266
    %386 = vmatprep.subr.mxu0 0.0
    %387 = vmatpush1.msra.mxu0 %v267
    %388 = vmatprep.subr.mxu0 0.0
    %389 = vmatpush1.msra.mxu0 %v268
    %390 = vmatprep.subr.mxu0 0.0
    %391 = vmatpush1.msra.mxu0 %v269
    %392 = vmatprep.subr.mxu0 0.0
    %393 = vmatpush1.msra.mxu0 %v270
    %394 = vmatprep.subr.mxu0 0.0
    %395 = vmatpush1.msra.mxu0 0.0
    %396 = vmatprep.subr.mxu0 0.0
    %397 = vmatpush1.msra.mxu0 0.0
    %398 = vmatprep.subr.mxu0 0.0
    %399 = vmatpush1.msra.mxu0 0.0
    %400 = vmatprep.subr.mxu0 0.0
    %401 = vmatpush1.msra.mxu0 0.0
    %402 = vmatprep.subr.mxu0 0.0
    %403 = vmatpush1.msra.mxu0 0.0
    %404 = vmatprep.subr.mxu0 0.0
    %405 = vmatpush1.msra.mxu0 0.0
    %406 = vmatprep.subr.mxu0 0.0
    %407 = vmatpush1.msra.mxu0 0.0
    %408 = vmatprep.subr.mxu0 0.0
    %409 = vmatpush1.msra.mxu0 0.0
    %410 = vmatprep.subr.mxu0 0.0
    %411 = vmatpush1.msra.mxu0 0.0
    %412 = vmatprep.subr.mxu0 0.0
    %413 = vmatpush1.msra.mxu0 0.0
    %414 = vmatprep.subr.mxu0 0.0
    %415 = vmatpush1.msra.mxu0 0.0
    %416 = vmatprep.subr.mxu0 0.0
    %417 = vmatpush1.msra.mxu0 0.0
    %418 = vmatprep.subr.mxu0 0.0
    %419 = vmatpush1.msra.mxu0 0.0
    %420 = vmatprep.subr.mxu0 0.0
    %421 = vmatpush1.msra.mxu0 0.0
    %422 = vmatprep.subr.mxu0 0.0
    %423 = vmatpush1.msra.mxu0 0.0
    %424 = vmatprep.subr.mxu0 0.0
    %425 = vmatpush1.msra.mxu0 0.0
    %426 = vmatprep.mubr.f32.mxu0 0.0
    %427 = vmatmul.mubr.f32.gmra.mrb[0].mxu0 %v354
    %v428 = vpop.f32.mrb[0].mxu0
    %v429 = vadd.f32 %v360, %v428
    %v430 = vpop.f32.mrb[0].mxu0
    %431 = vmatprep.mubr.f32.mxu0 0.0
    %432 = vmatmul.mubr.f32.gmra.mrb[0].mxu0 %v355
    %v433 = vpop.f32.mrb[0].mxu0
    %v434 = vadd.f32 %v360, %v433
    %v435 = vpop.f32.mrb[0].mxu0
    %436 = vdwg.mxu0
    %v437 = vmax.f32 %v429, 0.0
    %v438 = vmax.f32 %v434, 0.0
    %v439 = vrot.slane %v437, 4
    %v440 = vadd.f32 %v437, %v439
    %v441 = vrot.slane %v440, 2
    %v442 = vadd.f32 %v440, %v441
    %v443 = vrot.slane %v442, 1
    %v444 = vadd.f32 %v442, %v443
    %v445 = vrot.slane %v438, 4
    %v446 = vadd.f32 %v438, %v445
    %v447 = vrot.slane %v446, 2
    %v448 = vadd.f32 %v446, %v447
    %v449 = vrot.slane %v448, 1
    %v450 = vadd.f32 %v448, %v449
    %v451 = vmul.f32 %v444, 0.125
    %v452 = vmul.f32 %v450, 0.125
    %v453 = vrot.slane %v437, 4
    %v454 = vmax.f32 %v437, %v453
    %v455 = vrot.slane %v454, 2
    %v456 = vmax.f32 %v454, %v455
    %v457 = vrot.slane %v456, 1
    %v458 = vmax.f32 %v456, %v457
    %v459 = vrot.slane %v438, 4
    %v460 = vmax.f32 %v438, %v459
    %v461 = vrot.slane %v460, 2
    %v462 = vmax.f32 %v460, %v461
    %v463 = vrot.slane %v462, 1
    %v464 = vmax.f32 %v462, %v463
    %v465 = vld [vmem:[#allocation8] sm:$0xff]
    %v466 = vld [vmem:[#allocation8 + $0x8] sm:$0xff]
    %v467 = vld [vmem:[#allocation8 + $0x10] sm:$0xff]
    %v468 = vld [vmem:[#allocation8 + $0x18] sm:$0xff]
    %v469 = vld [vmem:[#allocation8 + $0x20] sm:$0xff]
    %v470 = vld [vmem:[#allocation8 + $0x28] sm:$0xff]
    %v471 = vld [vmem:[#allocation8 + $0x30] sm:$0xff]
    %v472 = vld [vmem:[#allocation8 + $0x38] sm:$0xff]
    %v473 = vld [vmem:[#allocation8 + $0x40] sm:$0xff]
    %v474 = vld [vmem:[#allocation8 + $0x48] sm:$0xff]
    %v475 = vld [vmem:[#allocation8 + $0x50] sm:$0xff]
    %v476 = vld [vmem:[#allocation8 + $0x58] sm:$0xff]
    %v477 = vld [vmem:[#allocation8 + $0x60] sm:$0xff]
    %v478 = vld [vmem:[#allocation8 + $0x68] sm:$0xff]
    %v479 = vld [vmem:[#allocation8 + $0x70] sm:$0xff]
    %v480 = vld [vmem:[#allocation8 + $0x78] sm:$0xff]
    %v481 = vld [vmem:[#allocation10] sm:$0xff]
    %v482 = vld [vmem:[#allocation10 + $0x8] sm:$0xff]
    %v483 = vld [vmem:[#allocation10 + $0x10] sm:$0xff]
    %v484 = vld [vmem:[#allocation10 + $0x18] sm:$0xff]
    %v485 = vld [vmem:[#allocation10 + $0x20] sm:$0xff]
    %v486 = vld [vmem:[#allocation10 + $0x28] sm:$0xff]
    %v487 = vld [vmem:[#allocation10 + $0x30] sm:$0xff]
    %v488 = vld [vmem:[#allocation10 + $0x38] sm:$0xff]
    %v489 = vld [vmem:[#allocation10 + $0x40] sm:$0xff]
    %v490 = vld [vmem:[#allocation10 + $0x48] sm:$0xff]
    %v491 = vld [vmem:[#allocation10 + $0x50] sm:$0xff]
    %v492 = vld [vmem:[#allocation10 + $0x58] sm:$0xff]
    %v493 = vld [vmem:[#allocation10 + $0x60] sm:$0xff]
    %v494 = vld [vmem:[#allocation10 + $0x68] sm:$0xff]
    %v495 = vld [vmem:[#allocation10 + $0x70] sm:$0xff]
    %v496 = vld [vmem:[#allocation10 + $0x78] sm:$0xff]
    %vm499 = vcmask 1041409
    %v500 = vsel %vm499, %v464, %v458
    %502 = vmatprep.subr.mxu0 0.0
    %503 = vmatpush1.msra.mxu0 %v481
    %504 = vmatprep.subr.mxu0 0.0
    %505 = vmatpush1.msra.mxu0 %v482
    %506 = vmatprep.subr.mxu0 0.0
    %507 = vmatpush1.msra.mxu0 %v483
    %508 = vmatprep.subr.mxu0 0.0
    %509 = vmatpush1.msra.mxu0 %v484
    %510 = vmatprep.subr.mxu0 0.0
    %511 = vmatpush1.msra.mxu0 %v485
    %512 = vmatprep.subr.mxu0 0.0
    %513 = vmatpush1.msra.mxu0 %v486
    %514 = vmatprep.subr.mxu0 0.0
    %515 = vmatpush1.msra.mxu0 %v487
    %516 = vmatprep.subr.mxu0 0.0
    %517 = vmatpush1.msra.mxu0 %v488
    %518 = vmatprep.subr.mxu0 0.0
    %519 = vmatpush1.msra.mxu0 %v489
    %520 = vmatprep.subr.mxu0 0.0
    %521 = vmatpush1.msra.mxu0 %v490
    %522 = vmatprep.subr.mxu0 0.0
    %523 = vmatpush1.msra.mxu0 %v491
    %524 = vmatprep.subr.mxu0 0.0
    %525 = vmatpush1.msra.mxu0 %v492
    %526 = vmatprep.subr.mxu0 0.0
    %527 = vmatpush1.msra.mxu0 %v493
    %528 = vmatprep.subr.mxu0 0.0
    %529 = vmatpush1.msra.mxu0 %v494
    %530 = vmatprep.subr.mxu0 0.0
    %531 = vmatpush1.msra.mxu0 %v495
    %532 = vmatprep.subr.mxu0 0.0
    %533 = vmatpush1.msra.mxu0 %v496
    %534 = vmatprep.subr.mxu0 0.0
    %535 = vmatpush1.msra.mxu0 0.0
    %536 = vmatprep.subr.mxu0 0.0
    %537 = vmatpush1.msra.mxu0 0.0
    %538 = vmatprep.subr.mxu0 0.0
    %539 = vmatpush1.msra.mxu0 0.0
    %540 = vmatprep.subr.mxu0 0.0
    %541 = vmatpush1.msra.mxu0 0.0
    %542 = vmatprep.subr.mxu0 0.0
    %543 = vmatpush1.msra.mxu0 0.0
    %544 = vmatprep.subr.mxu0 0.0
    %545 = vmatpush1.msra.mxu0 0.0
    %546 = vmatprep.subr.mxu0 0.0
    %547 = vmatpush1.msra.mxu0 0.0
    %548 = vmatprep.subr.mxu0 0.0
    %549 = vmatpush1.msra.mxu0 0.0
    %550 = vmatprep.subr.mxu0 0.0
    %551 = vmatpush1.msra.mxu0 0.0
    %552 = vmatprep.subr.mxu0 0.0
    %553 = vmatpush1.msra.mxu0 0.0
    %554 = vmatprep.subr.mxu0 0.0
    %555 = vmatpush1.msra.mxu0 0.0
    %556 = vmatprep.subr.mxu0 0.0
    %557 = vmatpush1.msra.mxu0 0.0
    %558 = vmatprep.subr.mxu0 0.0
    %559 = vmatpush1.msra.mxu0 0.0
    %560 = vmatprep.subr.mxu0 0.0
    %561 = vmatpush1.msra.mxu0 0.0
    %562 = vmatprep.subr.mxu0 0.0
    %563 = vmatpush1.msra.mxu0 0.0
    %564 = vmatprep.subr.mxu0 0.0
    %565 = vmatpush1.msra.mxu0 0.0
    %566 = vmatprep.mubr.f32.mxu0 0.0
    %567 = vmatmul.mubr.f32.gmra.mrb[0].mxu0 %v500
    %v568 = vpop.f32.mrb[0].mxu0
    %v569 = vadd.f32 0.0, %v568
    %v570 = vpop.f32.mrb[0].mxu0
    %571 = vdwg.mxu0
    %v574 = vsel %vm499, %v452, %v451
    %576 = vmatprep.subr.mxu0 0.0
    %577 = vmatpush1.msra.mxu0 %v465
    %578 = vmatprep.subr.mxu0 0.0
    %579 = vmatpush1.msra.mxu0 %v466
    %580 = vmatprep.subr.mxu0 0.0
    %581 = vmatpush1.msra.mxu0 %v467
    %582 = vmatprep.subr.mxu0 0.0
    %583 = vmatpush1.msra.mxu0 %v468
    %584 = vmatprep.subr.mxu0 0.0
    %585 = vmatpush1.msra.mxu0 %v469
    %586 = vmatprep.subr.mxu0 0.0
    %587 = vmatpush1.msra.mxu0 %v470
    %588 = vmatprep.subr.mxu0 0.0
    %589 = vmatpush1.msra.mxu0 %v471
    %590 = vmatprep.subr.mxu0 0.0
    %591 = vmatpush1.msra.mxu0 %v472
    %592 = vmatprep.subr.mxu0 0.0
    %593 = vmatpush1.msra.mxu0 %v473
    %594 = vmatprep.subr.mxu0 0.0
    %595 = vmatpush1.msra.mxu0 %v474
    %596 = vmatprep.subr.mxu0 0.0
    %597 = vmatpush1.msra.mxu0 %v475
    %598 = vmatprep.subr.mxu0 0.0
    %599 = vmatpush1.msra.mxu0 %v476
    %600 = vmatprep.subr.mxu0 0.0
    %601 = vmatpush1.msra.mxu0 %v477
    %602 = vmatprep.subr.mxu0 0.0
    %603 = vmatpush1.msra.mxu0 %v478
    %604 = vmatprep.subr.mxu0 0.0
    %605 = vmatpush1.msra.mxu0 %v479
    %606 = vmatprep.subr.mxu0 0.0
    %607 = vmatpush1.msra.mxu0 %v480
    %608 = vmatprep.subr.mxu0 0.0
    %609 = vmatpush1.msra.mxu0 0.0
    %610 = vmatprep.subr.mxu0 0.0
    %611 = vmatpush1.msra.mxu0 0.0
    %612 = vmatprep.subr.mxu0 0.0
    %613 = vmatpush1.msra.mxu0 0.0
    %614 = vmatprep.subr.mxu0 0.0
    %615 = vmatpush1.msra.mxu0 0.0
    %616 = vmatprep.subr.mxu0 0.0
    %617 = vmatpush1.msra.mxu0 0.0
    %618 = vmatprep.subr.mxu0 0.0
    %619 = vmatpush1.msra.mxu0 0.0
    %620 = vmatprep.subr.mxu0 0.0
    %621 = vmatpush1.msra.mxu0 0.0
    %622 = vmatprep.subr.mxu0 0.0
    %623 = vmatpush1.msra.mxu0 0.0
    %624 = vmatprep.subr.mxu0 0.0
    %625 = vmatpush1.msra.mxu0 0.0
    %626 = vmatprep.subr.mxu0 0.0
    %627 = vmatpush1.msra.mxu0 0.0
    %628 = vmatprep.subr.mxu0 0.0
    %629 = vmatpush1.msra.mxu0 0.0
    %630 = vmatprep.subr.mxu0 0.0
    %631 = vmatpush1.msra.mxu0 0.0
    %632 = vmatprep.subr.mxu0 0.0
    %633 = vmatpush1.msra.mxu0 0.0
    %634 = vmatprep.subr.mxu0 0.0
    %635 = vmatpush1.msra.mxu0 0.0
    %636 = vmatprep.subr.mxu0 0.0
    %637 = vmatpush1.msra.mxu0 0.0
    %638 = vmatprep.subr.mxu0 0.0
    %639 = vmatpush1.msra.mxu0 0.0
    %640 = vmatprep.mubr.f32.mxu0 0.0
    %641 = vmatmul.mubr.f32.gmra.mrb[0].mxu0 %v574
    %v642 = vpop.f32.mrb[0].mxu0
    %v643 = vadd.f32 %v569, %v642
    %v644 = vpop.f32.mrb[0].mxu0
    %645 = vdwg.mxu0
    %v646 = vld [vmem:[%s7] sm:$0x1]
    %v648 = vlaneseq
    %v649 = vshrl.u32 %v648, 7
    %v650 = vsub.s32 0, %v649
    %v651 = vrot.slane %v646, %v650
    %v653 = vadd.f32 %v643, %v651
    %v654 = vmax.f32 %v653, 0.0
    %v655 = vld [vmem:[#allocation11] sm:$0xff]
    %v656 = vld [vmem:[#allocation11 + $0x8] sm:$0xff]
    %v657 = vld [vmem:[#allocation11 + $0x10] sm:$0xff]
    %v658 = vld [vmem:[#allocation11 + $0x18] sm:$0xff]
    %v659 = vld [vmem:[#allocation11 + $0x20] sm:$0xff]
    %v660 = vld [vmem:[#allocation11 + $0x28] sm:$0xff]
    %v661 = vld [vmem:[#allocation11 + $0x30] sm:$0xff]
    %v662 = vld [vmem:[#allocation11 + $0x38] sm:$0xff]
    %v663 = vld [vmem:[#allocation11 + $0x40] sm:$0xff]
    %v664 = vld [vmem:[#allocation11 + $0x48] sm:$0xff]
    %v665 = vld [vmem:[#allocation11 + $0x50] sm:$0xff]
    %v666 = vld [vmem:[#allocation11 + $0x58] sm:$0xff]
    %v667 = vld [vmem:[#allocation11 + $0x60] sm:$0xff]
    %v668 = vld [vmem:[#allocation11 + $0x68] sm:$0xff]
    %v669 = vld [vmem:[#allocation11 + $0x70] sm:$0xff]
    %v670 = vld [vmem:[#allocation11 + $0x78] sm:$0xff]
    %v671 = vld [vmem:[%s9] sm:$0x1]
    %v673 = vlaneseq
    %v674 = vshrl.u32 %v673, 7
    %v675 = vsub.s32 0, %v674
    %v676 = vrot.slane %v671, %v675
    %678 = vmatprep.subr.mxu0 0.0
    %679 = vmatpush1.msra.mxu0 %v655
    %680 = vmatprep.subr.mxu0 0.0
    %681 = vmatpush1.msra.mxu0 %v656
    %682 = vmatprep.subr.mxu0 0.0
    %683 = vmatpush1.msra.mxu0 %v657
    %684 = vmatprep.subr.mxu0 0.0
    %685 = vmatpush1.msra.mxu0 %v658
    %686 = vmatprep.subr.mxu0 0.0
    %687 = vmatpush1.msra.mxu0 %v659
    %688 = vmatprep.subr.mxu0 0.0
    %689 = vmatpush1.msra.mxu0 %v660
    %690 = vmatprep.subr.mxu0 0.0
    %691 = vmatpush1.msra.mxu0 %v661
    %692 = vmatprep.subr.mxu0 0.0
    %693 = vmatpush1.msra.mxu0 %v662
    %694 = vmatprep.subr.mxu0 0.0
    %695 = vmatpush1.msra.mxu0 %v663
    %696 = vmatprep.subr.mxu0 0.0
    %697 = vmatpush1.msra.mxu0 %v664
    %698 = vmatprep.subr.mxu0 0.0
    %699 = vmatpush1.msra.mxu0 %v665
    %700 = vmatprep.subr.mxu0 0.0
    %701 = vmatpush1.msra.mxu0 %v666
    %702 = vmatprep.subr.mxu0 0.0
    %703 = vmatpush1.msra.mxu0 %v667
    %704 = vmatprep.subr.mxu0 0.0
    %705 = vmatpush1.msra.mxu0 %v668
    %706 = vmatprep.subr.mxu0 0.0
    %707 = vmatpush1.msra.mxu0 %v669
    %708 = vmatprep.subr.mxu0 0.0
    %709 = vmatpush1.msra.mxu0 %v670
    %710 = vmatprep.subr.mxu0 0.0
    %711 = vmatpush1.msra.mxu0 0.0
    %712 = vmatprep.subr.mxu0 0.0
    %713 = vmatpush1.msra.mxu0 0.0
    %714 = vmatprep.subr.mxu0 0.0
    %715 = vmatpush1.msra.mxu0 0.0
    %716 = vmatprep.subr.mxu0 0.0
    %717 = vmatpush1.msra.mxu0 0.0
    %718 = vmatprep.subr.mxu0 0.0
    %719 = vmatpush1.msra.mxu0 0.0
    %720 = vmatprep.subr.mxu0 0.0
    %721 = vmatpush1.msra.mxu0 0.0
    %722 = vmatprep.subr.mxu0 0.0
    %723 = vmatpush1.msra.mxu0 0.0
    %724 = vmatprep.subr.mxu0 0.0
    %725 = vmatpush1.msra.mxu0 0.0
    %726 = vmatprep.subr.mxu0 0.0
    %727 = vmatpush1.msra.mxu0 0.0
    %728 = vmatprep.subr.mxu0 0.0
    %729 = vmatpush1.msra.mxu0 0.0
    %730 = vmatprep.subr.mxu0 0.0
    %731 = vmatpush1.msra.mxu0 0.0
    %732 = vmatprep.subr.mxu0 0.0
    %733 = vmatpush1.msra.mxu0 0.0
    %734 = vmatprep.subr.mxu0 0.0
    %735 = vmatpush1.msra.mxu0 0.0
    %736 = vmatprep.subr.mxu0 0.0
    %737 = vmatpush1.msra.mxu0 0.0
    %738 = vmatprep.subr.mxu0 0.0
    %739 = vmatpush1.msra.mxu0 0.0
    %740 = vmatprep.subr.mxu0 0.0
    %741 = vmatpush1.msra.mxu0 0.0
    %742 = vmatprep.mubr.f32.mxu0 0.0
    %743 = vmatmul.mubr.f32.gmra.mrb[0].mxu0 %v654
    %v744 = vpop.f32.mrb[0].mxu0
    %v745 = vadd.f32 %v676, %v744
    %v746 = vpop.f32.mrb[0].mxu0
    %747 = vdwg.mxu0
    %v748 = vmax.f32 %v745, 0.0
    %v749 = vld [vmem:[#allocation13] sm:$0xff]
    %v750 = vld [vmem:[#allocation13 + $0x8] sm:$0xff]
    %v751 = vld [vmem:[#allocation13 + $0x10] sm:$0xff]
    %v752 = vld [vmem:[#allocation13 + $0x18] sm:$0xff]
    %v753 = vld [vmem:[#allocation13 + $0x20] sm:$0xff]
    %v754 = vld [vmem:[#allocation13 + $0x28] sm:$0xff]
    %v755 = vld [vmem:[#allocation13 + $0x30] sm:$0xff]
    %v756 = vld [vmem:[#allocation13 + $0x38] sm:$0xff]
    %v757 = vld [vmem:[#allocation13 + $0x40] sm:$0xff]
    %v758 = vld [vmem:[#allocation13 + $0x48] sm:$0xff]
    %v759 = vld [vmem:[#allocation13 + $0x50] sm:$0xff]
    %v760 = vld [vmem:[#allocation13 + $0x58] sm:$0xff]
    %v761 = vld [vmem:[#allocation13 + $0x60] sm:$0xff]
    %v762 = vld [vmem:[#allocation13 + $0x68] sm:$0xff]
    %v763 = vld [vmem:[#allocation13 + $0x70] sm:$0xff]
    %v764 = vld [vmem:[#allocation13 + $0x78] sm:$0xff]
    %v765 = vld [vmem:[%s11] sm:$0x1]
    %v767 = vlaneseq
    %v768 = vshrl.u32 %v767, 7
    %v769 = vsub.s32 0, %v768
    %v770 = vrot.slane %v765, %v769
    %772 = vmatprep.subr.mxu0 0.0
    %773 = vmatpush1.msra.mxu0 %v749
    %774 = vmatprep.subr.mxu0 0.0
    %775 = vmatpush1.msra.mxu0 %v750
    %776 = vmatprep.subr.mxu0 0.0
    %777 = vmatpush1.msra.mxu0 %v751
    %778 = vmatprep.subr.mxu0 0.0
    %779 = vmatpush1.msra.mxu0 %v752
    %780 = vmatprep.subr.mxu0 0.0
    %781 = vmatpush1.msra.mxu0 %v753
    %782 = vmatprep.subr.mxu0 0.0
    %783 = vmatpush1.msra.mxu0 %v754
    %784 = vmatprep.subr.mxu0 0.0
    %785 = vmatpush1.msra.mxu0 %v755
    %786 = vmatprep.subr.mxu0 0.0
    %787 = vmatpush1.msra.mxu0 %v756
    %788 = vmatprep.subr.mxu0 0.0
    %789 = vmatpush1.msra.mxu0 %v757
    %790 = vmatprep.subr.mxu0 0.0
    %791 = vmatpush1.msra.mxu0 %v758
    %792 = vmatprep.subr.mxu0 0.0
    %793 = vmatpush1.msra.mxu0 %v759
    %794 = vmatprep.subr.mxu0 0.0
    %795 = vmatpush1.msra.mxu0 %v760
    %796 = vmatprep.subr.mxu0 0.0
    %797 = vmatpush1.msra.mxu0 %v761
    %798 = vmatprep.subr.mxu0 0.0
    %799 = vmatpush1.msra.mxu0 %v762
    %800 = vmatprep.subr.mxu0 0.0
    %801 = vmatpush1.msra.mxu0 %v763
    %802 = vmatprep.subr.mxu0 0.0
    %803 = vmatpush1.msra.mxu0 %v764
    %804 = vmatprep.subr.mxu0 0.0
    %805 = vmatpush1.msra.mxu0 0.0
    %806 = vmatprep.subr.mxu0 0.0
    %807 = vmatpush1.msra.mxu0 0.0
    %808 = vmatprep.subr.mxu0 0.0
    %809 = vmatpush1.msra.mxu0 0.0
    %810 = vmatprep.subr.mxu0 0.0
    %811 = vmatpush1.msra.mxu0 0.0
    %812 = vmatprep.subr.mxu0 0.0
    %813 = vmatpush1.msra.mxu0 0.0
    %814 = vmatprep.subr.mxu0 0.0
    %815 = vmatpush1.msra.mxu0 0.0
    %816 = vmatprep.subr.mxu0 0.0
    %817 = vmatpush1.msra.mxu0 0.0
    %818 = vmatprep.subr.mxu0 0.0
    %819 = vmatpush1.msra.mxu0 0.0
    %820 = vmatprep.subr.mxu0 0.0
    %821 = vmatpush1.msra.mxu0 0.0
    %822 = vmatprep.subr.mxu0 0.0
    %823 = vmatpush1.msra.mxu0 0.0
    %824 = vmatprep.subr.mxu0 0.0
    %825 = vmatpush1.msra.mxu0 0.0
    %826 = vmatprep.subr.mxu0 0.0
    %827 = vmatpush1.msra.mxu0 0.0
    %828 = vmatprep.subr.mxu0 0.0
    %829 = vmatpush1.msra.mxu0 0.0
    %830 = vmatprep.subr.mxu0 0.0
    %831 = vmatpush1.msra.mxu0 0.0
    %832 = vmatprep.subr.mxu0 0.0
    %833 = vmatpush1.msra.mxu0 0.0
    %834 = vmatprep.subr.mxu0 0.0
    %835 = vmatpush1.msra.mxu0 0.0
    %836 = vmatprep.mubr.f32.mxu0 0.0
    %837 = vmatmul.mubr.f32.gmra.mrb[0].mxu0 %v748
    %v838 = vpop.f32.mrb[0].mxu0
    %v839 = vadd.f32 %v770, %v838
    %v840 = vpop.f32.mrb[0].mxu0
    %841 = vdwg.mxu0
    %842 = vst [vmem:[#allocation14] sm:$0x3] %v839
    // Predicated region
    $region78: #{tpu_custom_call.1} parent=1 // pred_check
      _
    $region79: #{tpu_custom_call.1} parent=1 // pred_check_branch
      %844 = sbr.rel (0) target = $region81
    $region80: #{tpu_custom_call.1} parent=1 // pred_region
      %s846 = ssub.s32 32, 32
      %847 = vsyncadd [#allocation4], %s846
      %s849 = sshll.u32 [#allocation14], 4
      %s850 = int_to_ptr.vmem [resolvable:$true] %s849
      %852 = dma.vmem_to_hbm [thread:$0]  %s850, 32, %s12, [#allocation4]
    $region81: #{tpu_custom_call.1} parent=1 // pred_fallthru
      _
    // Predicated region
    $region82: #{tpu_custom_call.1} parent=1 // pred_check
      _
    $region83: #{tpu_custom_call.1} parent=1 // pred_check_branch
      %854 = sbr.rel (0) target = $region85
    $region84: #{tpu_custom_call.1} parent=1 // pred_region
      %855 = dma.done [#allocation4], 32
    $region85: #{tpu_custom_call.1} parent=1 // pred_fallthru
      _
    %856 = vsyncpa [#allocation3], 1
    %857 = vsyncpa [#allocation6], 1
    %858 = vsyncpa [#allocation9], 1
    %859 = vsyncpa [#allocation12], 1
    %860 = vsyncpa [#allocation4], 1

</llo_original>
